<compile_context>
chip_gen: v6e
topology: v6e:2x2x1
jax: 0.10.0
libtpu: 0.0.40
codegen_flags: <defaults>
</compile_context>

<pallas_src>
import functools

import jax
import jax.numpy as jnp
from jax import lax
from jax.experimental import pallas as pl
from jax.experimental.pallas import tpu as pltpu


_EPS = 1e-12  # matches torch.nn.functional.normalize default eps


def _normalize_rows_f32(x):
    sq_sum = jnp.sum(x * x, axis=1, keepdims=True)
    # x / max(sqrt(ss), eps)  ==  x * rsqrt(max(ss, eps^2));  rsqrt -> EUP slot.
    return x * lax.rsqrt(jnp.maximum(sq_sum, _EPS * _EPS))


# ----------------------------- dense path -----------------------------------


def _l2_normalize_kernel(attr_ref, out_ref):
    # attr_ref / out_ref: (tile_rows, embed_dim) VMEM tiles.
    x = attr_ref[...].astype(jnp.float32)
    out_ref[...] = _normalize_rows_f32(x).astype(out_ref.dtype)


def _choose_tile_rows(num_classes, embed_dim, itemsize, target_tile_bytes=4 << 20):
    """Row-tile: ~4 MiB per block (amortizes per-step overhead), sublane-aligned,
    capped so the grid keeps >= 4 steps when there is enough work (>= 2 steps
    per TensorCore on v7x's megacore; harmless on single-TC v5e/v6e)."""
    row_align = max(8, 32 // max(1, itemsize))  # 8 f32, 16 bf16, 32 int8
    row_bytes = max(1, embed_dim * itemsize)
    rows = (target_tile_bytes // row_bytes) // row_align * row_align
    rows = max(row_align, rows)
    quarter = (-(-num_classes // 4) + row_align - 1) // row_align * row_align
    return min(rows, max(row_align, quarter))


# ----------------------------- gather path -----------------------------------


def _gather_normalize_kernel(idx_ref, attr_hbm, out_ref, buf, sem, *, block_g):
    # idx_ref: (n_pad,) int32 in SMEM (scalar prefetch).
    # attr_hbm: full (num_classes, embed_dim) ref left in HBM (pl.ANY).
    # out_ref:  (block_g, embed_dim) VMEM output block.
    # buf:      (2, block_g, embed_dim) VMEM double buffer.
    # sem:      (2, block_g) DMA semaphores.
    i = pl.program_id(0)
    n = pl.num_programs(0)
    slot = i & 1

    def fetch(block, s):
        base = block * block_g
        for g in range(block_g):  # static unroll; block_g is small
            row = idx_ref[base + g]
            pltpu.make_async_copy(
                attr_hbm.at[pl.ds(row, 1), :],
                buf.at[s, pl.ds(g, 1), :],
                sem.at[s, g],
            ).start()

    @pl.when(i == 0)
    def _():
        fetch(0, 0)

    # Prefetch next block's rows into the other slot while we work on this one.
    @pl.when(i + 1 < n)
    def _():
        fetch(i + 1, (i + 1) & 1)

    # Wait for the current block's rows.
    for g in range(block_g):
        pltpu.make_async_copy(
            attr_hbm.at[pl.ds(0, 1), :],
            buf.at[slot, pl.ds(g, 1), :],
            sem.at[slot, g],
        ).wait()

    x = buf[slot].astype(jnp.float32)
    out_ref[...] = _normalize_rows_f32(x).astype(out_ref.dtype)


def _choose_gather_block(n_idx, embed_dim, itemsize):
    """Indices per grid step: multiple of the dtype sublane pack, up to 64,
    but not wildly larger than the actual request (limits padding waste)."""
    sublane = max(8, 32 // max(1, itemsize))  # 8 f32, 16 bf16, 32 int8
    g = min(64, sublane * 4)                  # 32 f32 / 64 bf16
    rounded_req = -(-n_idx // sublane) * sublane
    return max(sublane, min(g, rounded_req))


# ------------------------------- wrapper -------------------------------------


def attribute_matrix_forward(attributes, indices=None):
    """Row-wise L2 normalization of `attributes`, optionally gathered by `indices`."""
    num_classes, embed_dim = attributes.shape
    itemsize = jnp.dtype(attributes.dtype).itemsize

    def _dense():
        tile_rows = _choose_tile_rows(num_classes, embed_dim, itemsize)
        grid = (pl.cdiv(num_classes, tile_rows),)  # partial last block is masked
        return pl.pallas_call(
            _l2_normalize_kernel,
            out_shape=jax.ShapeDtypeStruct((num_classes, embed_dim), attributes.dtype),
            grid_spec=pltpu.PrefetchScalarGridSpec(
                num_scalar_prefetch=0,
                grid=grid,
                in_specs=[pl.BlockSpec((tile_rows, embed_dim), lambda i: (i, 0))],
                out_specs=pl.BlockSpec((tile_rows, embed_dim), lambda i: (i, 0)),
            ),
            compiler_params=pltpu.CompilerParams(
                dimension_semantics=("parallel",),
                # 2 arrays x 2 pipeline buffers x ~4 MiB tile = 16 MiB < 32 MiB
                # scoped budget (safe on v5e/v6e/v7x).
                vmem_limit_bytes=32 << 20,
            ),
            cost_estimate=pl.CostEstimate(
                flops=3 * num_classes * embed_dim,
                transcendentals=num_classes,
                bytes_accessed=2 * num_classes * embed_dim * itemsize,
            ),
        )(attributes)

    if indices is None:
        return _dense()

    indices = jnp.asarray(indices)
    idx_shape = indices.shape
    flat_idx = indices.reshape(-1).astype(jnp.int32)
    n_idx = int(flat_idx.shape[0])

    # PyTorch advanced indexing accepts negative indices: wrap, then clamp so
    # a bad index can never trigger an out-of-bounds DMA.
    flat_idx = jnp.where(flat_idx < 0, flat_idx + num_classes, flat_idx)
    flat_idx = jnp.clip(flat_idx, 0, num_classes - 1)

    # Fallback: when the gather touches (roughly) the whole table, the dense
    # tiled path at HBM roofline + an XLA gather beats per-row random DMAs.
    if n_idx == 0 or n_idx >= num_classes:
        attr = _dense()
        return jnp.take(attr, flat_idx, axis=0).reshape(idx_shape + (embed_dim,))

    block_g = _choose_gather_block(n_idx, embed_dim, itemsize)
    n_blocks = pl.cdiv(n_idx, block_g)
    n_pad = n_blocks * block_g
    # Pad indices so every grid step reads valid SMEM entries; padded entries
    # point at row 0 (always in range). The partial last output block is masked.
    flat_idx_padded = jnp.pad(flat_idx, (0, n_pad - n_idx))

    kernel = functools.partial(_gather_normalize_kernel, block_g=block_g)
    gathered = pl.pallas_call(
        kernel,
        out_shape=jax.ShapeDtypeStruct((n_idx, embed_dim), attributes.dtype),
        grid_spec=pltpu.PrefetchScalarGridSpec(
            num_scalar_prefetch=1,  # flat_idx_padded -> SMEM
            grid=(n_blocks,),
            in_specs=[pl.BlockSpec(memory_space=pl.ANY)],  # attributes stay in HBM
            out_specs=pl.BlockSpec((block_g, embed_dim), lambda i, idx_ref: (i, 0)),
            scratch_shapes=[
                pltpu.VMEM((2, block_g, embed_dim), attributes.dtype),
                pltpu.SemaphoreType.DMA((2, block_g)),
            ],
        ),
        compiler_params=pltpu.CompilerParams(
            # The double-buffered prefetch carries scratch state across steps:
            # keep the grid strictly sequential.
            dimension_semantics=("arbitrary",),
            vmem_limit_bytes=32 << 20,
        ),
        cost_estimate=pl.CostEstimate(
            flops=3 * n_pad * embed_dim,
            transcendentals=n_pad,
            bytes_accessed=2 * n_pad * embed_dim * itemsize,
        ),
    )(flat_idx_padded, attributes)

    return gathered.reshape(idx_shape + (embed_dim,))


# ------------------------------- reference -----------------------------------


def _reference(attributes, indices=None):
    x = attributes.astype(jnp.float32)
    denom = jnp.maximum(jnp.sqrt(jnp.sum(x * x, axis=1, keepdims=True)), _EPS)
    attr = (x / denom).astype(attributes.dtype)
    if indices is None:
        return attr
    idx = jnp.asarray(indices)
    idx = jnp.where(idx < 0, idx + attributes.shape[0], idx)
    return attr[idx]


if __name__ == "__main__":
    # Deterministic example parameters (torch.randn(num_classes, embed_dim)
    # shape-wise; values from the JAX PRNG). num_classes intentionally not a
    # multiple of 8 to exercise masked partial row blocks.
    num_classes, embed_dim = 37, 128
    key = jax.random.PRNGKey(0)
    k_attr, k_idx = jax.random.split(key)
    attributes = jax.random.normal(k_attr, (num_classes, embed_dim), dtype=jnp.float32)

    # indices=None -> full normalized matrix (dense tiled path).
    out_full = jax.block_until_ready(attribute_matrix_forward(attributes, None))

    # Small gather (one block), includes a negative index.
    idx_small = jnp.array([3, 0, 7, 5, 12, -1], dtype=jnp.int32)
    out_small = jax.block_until_ready(attribute_matrix_forward(attributes, idx_small))

    # Larger 2-D gather (multiple grid blocks -> exercises the double-buffered
    # cross-step prefetch and a masked partial last output block).
    idx_multi = jax.random.randint(k_idx, (3, 12), 0, num_classes, dtype=jnp.int32)
    out_multi = jax.block_until_ready(attribute_matrix_forward(attributes, idx_multi))

    # Gather covering more rows than the table -> dense-path fallback.
    idx_big = (jnp.arange(40, dtype=jnp.int32) * 7) % num_classes
    out_big = jax.block_until_ready(attribute_matrix_forward(attributes, idx_big))

    # Correctness checks against a pure-JAX reference.
    assert out_full.shape == (num_classes, embed_dim)
    assert out_small.shape == (6, embed_dim)
    assert out_multi.shape == (3, 12, embed_dim)
    assert out_big.shape == (40, embed_dim)
    assert jnp.allclose(out_full, _reference(attributes, None), atol=1e-5, rtol=1e-5)
    assert jnp.allclose(out_small, _reference(attributes, idx_small), atol=1e-5, rtol=1e-5)
    assert jnp.allclose(out_multi, _reference(attributes, idx_multi), atol=1e-5, rtol=1e-5)
    assert jnp.allclose(out_big, _reference(attributes, idx_big), atol=1e-5, rtol=1e-5)

    print("KERNEL_OK")
</pallas_src>

<mosaic_0001>
module attributes {stable_mosaic.version = 11 : i64} {
  func.func @_l2_normalize_kernel(%arg0: i32, %arg1: memref<16x128xf32, #tpu.memory_space<vmem>>, %arg2: memref<16x128xf32, #tpu.memory_space<vmem>>) attributes {dimension_semantics = [#tpu.dimension_semantics<parallel>], iteration_bounds = array<i64: 3>, scalar_prefetch = 0 : i64, scratch_operands = 0 : i64, tpu.core_type = #tpu.core_type<tc>, window_params = [{transform_indices = @transform_0, window_bounds = array<i64: 16, 128>}, {transform_indices = @transform_1, window_bounds = array<i64: 16, 128>}]} {
    %c0 = arith.constant 0 : index
    %c0_0 = arith.constant 0 : index
    %0 = vector.load %arg1[%c0, %c0_0] : memref<16x128xf32, #tpu.memory_space<vmem>>, vector<16x128xf32>
    %1 = arith.mulf %0, %0 : vector<16x128xf32>
    %cst = arith.constant dense<0.000000e+00> : vector<16xf32>
    %2 = vector.multi_reduction <add>, %1, %cst [1] : vector<16x128xf32> to vector<16xf32>
    %3 = vector.shape_cast %2 : vector<16xf32> to vector<16x1xf32>
    %cst_1 = arith.constant 1.000000e-24 : f32
    %4 = vector.broadcast %cst_1 : f32 to vector<16x1xf32>
    %5 = arith.maximumf %3, %4 : vector<16x1xf32>
    %6 = math.rsqrt %5 : vector<16x1xf32>
    %7 = vector.broadcast %6 : vector<16x1xf32> to vector<16x128xf32>
    %8 = arith.mulf %0, %7 : vector<16x128xf32>
    %c0_2 = arith.constant 0 : index
    %c0_3 = arith.constant 0 : index
    %9 = vector.load %arg2[%c0_2, %c0_3] : memref<16x128xf32, #tpu.memory_space<vmem>>, vector<16x128xf32>
    tpu.vector_store %arg2[%c0_2, %c0_3], %8 {strides = array<i32>} : memref<16x128xf32, #tpu.memory_space<vmem>>, vector<16x128xf32>,
    return
  }
  func.func @transform_0(%arg0: i32) -> (i32, i32) {
    %c0_i32 = arith.constant 0 : i32
    %c0_i32_0 = arith.constant 0 : i32
    return %arg0, %c0_i32 : i32, i32
  }
  func.func @transform_1(%arg0: i32) -> (i32, i32) {
    %c0_i32 = arith.constant 0 : i32
    %c0_i32_0 = arith.constant 0 : i32
    return %arg0, %c0_i32 : i32, i32
  }
}

</mosaic_0001>

<llo_original>
// kernel: tpu_custom_call.1
$region0: #{tpu_custom_call.1}
  #allocation0 [shape = 'u32[]', space=smem, size = 0x4, offset = 0x4, fixed_abs, tag = 'smem constant byte address 0x4 - core index']
  #allocation1 [shape = 'u32[144,128]{1,0:T(1,128)}', space=vmem, size = 0x12000, scoped, tag = 'internal scratch']
  %s0 = inlined_call_operand.hbm [shape: f32[37,128], index: 0, kind: input, shape index: {}]
  %s1 = inlined_call_operand.hbm [shape: f32[37,128], index: 1, kind: output, shape index: {}]
  %s2 = sld [smem:[#allocation0]]
  $region41: #{tpu_custom_call.1} parent=0
    _
  %s4 = ssub.s32 1, %s2
  %s5 = scalar_select 0, %s4, %s2
  $region1: #{tpu_custom_call.1} parent=0
    #allocation2 [shape = 'u8[16384]{0}', space=vmem, size = 0x4000, scoped, tag = 'input window, operand 0']
    #allocation3 [shape = 's32[2]{0}', space=sflag, size = 0x8, scoped, tag = 'scoped memory for tpu_custom_call.1']
    #allocation4 [shape = 's32[2]{0}', space=sflag, size = 0x8, scoped, tag = 'scoped memory for tpu_custom_call.1']
    #allocation5 [shape = 'u8[16384]{0}', space=vmem, size = 0x4000, scoped, tag = 'output window, operand 0']
    %6 = vsyncpa [#allocation3], 0
    %s7 = scalar_lea.sflag [#allocation3], 1
    %8 = vsyncpa %s7, 0
    %9 = vsyncpa [#allocation4], 0
    %s10 = scalar_lea.sflag [#allocation4], 1
    %11 = vsyncpa %s10, 0
    loop: start=0, step=1, limit=5
    $region2: #{tpu_custom_call.1} parent=1 // loop_pre_header
      _
    $region3: #{tpu_custom_call.1} parent=1 // loop_header
      %s13 = sphi 0, %s17
      %p14 = scmp.ge.s32.totalorder %s13, 5
      %s23 = sphi 0, %s25
      %s26 = sphi 0, %s23
      %s27 = sphi 0, %s26
      %s43 = sphi 0, %s27
      %s49 = sphi 0, %s51
      %s52 = sphi 0, %s49
      %s53 = sphi 0, %s52
      %s69 = sphi 0, %s53
    $region4: #{tpu_custom_call.1} parent=1 // loop_header_branch
      %16 = sbr.rel (%p14) target = $region8
    $region5: #{tpu_custom_call.1} parent=1 // loop_body
      %s18 = ssub.s32 %s13, 1
      %s19 = ssub.s32 %s13, 2
      %s20 = sadd.s32 %s13, 1
      %s21 = ssub.s32 %s13, %s20
      %p22 = scmp.eq.s32.totalorder %s21, 0
      %s24 = sadd.s32 %s23, 1
      %s25 = scalar_select %p22, %s23, %s24
      %p28 = pneg %p22
      %p29 = scmp.eq.s32.totalorder %s13, 2
      %p30 = por %p28, %p29
      %p31 = scmp.ne.s32.totalorder %s23, %s26
      %p32 = scmp.eq.s32.totalorder %s13, 0
      %p33 = por %p31, %p32
      %p34 = scmp.ne.s32.totalorder %s23, %s26
      %p35 = scmp.eq.s32.totalorder %s18, 2
      %p36 = por %p34, %p35
      %p37 = scmp.ne.s32.totalorder %s26, %s27
      %p38 = scmp.eq.s32.totalorder %s18, 0
      %p39 = por %p37, %p38
      %p40 = scmp.ne.s32.totalorder %s26, %s27
      %p41 = scmp.eq.s32.totalorder %s19, 2
      %p42 = por %p40, %p41
      %p44 = scmp.ne.s32.totalorder %s27, %s43
      %p45 = scmp.eq.s32.totalorder %s19, 0
      %p46 = por %p44, %p45
      %s47 = ssub.s32 %s13, %s20
      %p48 = scmp.eq.s32.totalorder %s47, 0
      %s50 = sadd.s32 %s49, 1
      %s51 = scalar_select %p48, %s49, %s50
      %p54 = pneg %p48
      %p55 = scmp.eq.s32.totalorder %s13, 2
      %p56 = por %p54, %p55
      %p57 = scmp.ne.s32.totalorder %s49, %s52
      %p58 = scmp.eq.s32.totalorder %s13, 0
      %p59 = por %p57, %p58
      %p60 = scmp.ne.s32.totalorder %s49, %s52
      %p61 = scmp.eq.s32.totalorder %s18, 2
      %p62 = por %p60, %p61
      %p63 = scmp.ne.s32.totalorder %s52, %s53
      %p64 = scmp.eq.s32.totalorder %s18, 0
      %p65 = por %p63, %p64
      %p66 = scmp.ne.s32.totalorder %s52, %s53
      %p67 = scmp.eq.s32.totalorder %s19, 2
      %p68 = por %p66, %p67
      %p70 = scmp.ne.s32.totalorder %s53, %s69
      %p71 = scmp.eq.s32.totalorder %s19, 0
      %p72 = por %p70, %p71
      %p73 = scmp.le.s32.totalorder 1, %s13
      %p74 = scmp.lt.s32.totalorder %s13, 4
      %p75 = pnand %p73, %p74
      %p76 = pneg %p75
      // Predicated region
      $region9: #{tpu_custom_call.1} parent=5 // pred_check
        _
      $region10: #{tpu_custom_call.1} parent=5 // pred_check_branch
        %78 = sbr.rel (%p75) target = $region12
      $region11: #{tpu_custom_call.1} parent=5 // pred_region
        %s79 = ssub.s32 %s13, 1
      $region12: #{tpu_custom_call.1} parent=5 // pred_fallthru
        _
      %p80 = scmp.lt.s32.totalorder %s13, 3
      // Predicated region
      $region13: #{tpu_custom_call.1} parent=5 // pred_check
        %p81 = pneg %p80
      $region14: #{tpu_custom_call.1} parent=5 // pred_check_branch
        %83 = sbr.rel (%p81) target = $region16
      $region15: #{tpu_custom_call.1} parent=5 // pred_region
        // Predicated region
        $region17: #{tpu_custom_call.1} parent=15 // pred_check
          %p84 = pneg %p33
        $region18: #{tpu_custom_call.1} parent=15 // pred_check_branch
          %86 = sbr.rel (%p84) target = $region20
        $region19: #{tpu_custom_call.1} parent=15 // pred_region
          %s87 = sand.u32 %s23, 1
          %s88 = scalar_lea.sflag [#allocation3], %s87
          %s89 = sand.u32 %s23, 1
          %s90 = smul.addr %s89, 16
          %s91 = scalar_lea.vmem [#allocation2], %s90
          %s92 = smul.u32 2, %s13
          %s93 = ssub.s32 5, %s92
          %p94 = scmp.lt.s32.totalorder %s93, 2
          %s95 = scalar_select %p94, %s93, 2
          %s96 = smul.u32 128, %s95
          %s98 = ssub.s32 256, %s96
          %99 = vsyncadd %s88, %s98
          %p100 = scmp.ne.s32.totalorder 0, %s96
          %s101 = smul.addr %s92, 128
          %s102 = scalar_lea.hbm %s0, %s101
          %s103 = smul.u32 8, %s95
          %s104 = sshll.u32 %s91, 4
          %s105 = int_to_ptr.vmem [resolvable:$true] %s104
          %s106 = sshll.u32 %s103, 4
          %110 = dma.hbm_to_vmem [thread:$0]  (%p100), %s102, %s106, %s105, %s88, 128, 128, 8
        $region20: #{tpu_custom_call.1} parent=15 // pred_fallthru
          _
      $region16: #{tpu_custom_call.1} parent=5 // pred_fallthru
        _
      %p111 = scmp.le.s32.totalorder 1, %s13
      %p112 = scmp.lt.s32.totalorder %s13, 4
      %p113 = pnand %p111, %p112
      %p114 = pneg %p113
      // Predicated region
      $region21: #{tpu_custom_call.1} parent=5 // pred_check
        _
      $region22: #{tpu_custom_call.1} parent=5 // pred_check_branch
        %116 = sbr.rel (%p113) target = $region24
      $region23: #{tpu_custom_call.1} parent=5 // pred_region
        %s117 = ssub.s32 %s13, 1
        %s118 = sand.u32 %s26, 1
        %s119 = scalar_lea.sflag [#allocation3], %s118
        %s120 = sand.u32 %s26, 1
        %s121 = smul.addr %s120, 16
        %s122 = scalar_lea.vmem [#allocation2], %s121
        // Predicated region
        $region25: #{tpu_custom_call.1} parent=23 // pred_check
          %p123 = pneg %p39
        $region26: #{tpu_custom_call.1} parent=23 // pred_check_branch
          %125 = sbr.rel (%p123) target = $region28
        $region27: #{tpu_custom_call.1} parent=23 // pred_region
          %126 = dma.done %s119, 256
        $region28: #{tpu_custom_call.1} parent=23 // pred_fallthru
          _
        %s127 = sand.u32 %s26, 1
        %s128 = scalar_lea.sflag [#allocation3], %s127
        %s129 = sand.u32 %s26, 1
        %s130 = smul.addr %s129, 16
        %s131 = scalar_lea.vmem [#allocation2], %s130
        %p132 = pneg %p39
        %p133 = pneg %p36
        %p134 = pneg %p65
        %p135 = pneg %p62
        %s136 = sand.u32 %s52, 1
        %s137 = scalar_lea.sflag [#allocation4], %s136
        %s138 = sand.u32 %s52, 1
        %s139 = smul.addr %s138, 16
        %s140 = scalar_lea.vmem [#allocation5], %s139
        %s141 = smul.u32 2, %s18
        %s142 = ssub.s32 5, %s141
        %p143 = scmp.lt.s32.totalorder %s142, 2
        %s144 = scalar_select %p143, %s142, 2
        %s145 = smul.u32 128, %s144
        %s146 = smul.u32 2, %s18
        %s147 = ssub.s32 5, %s146
        %p148 = scmp.lt.s32.totalorder %s147, 2
        %s149 = scalar_select %p148, %s147, 2
        %s150 = smul.u32 128, %s149
        %v151 = vld [vmem:[%s122] sm:$0xff]
        %v152 = vld [vmem:[%s122 + $0x8] sm:$0xff]
        %v153 = vmul.f32 %v151, %v151
        %v154 = vmul.f32 %v152, %v152
        %155 = vadd.xlane.f32.xlu0 %v153
        %v156 = vpop.xlane.xlu0 %155
        %157 = vadd.xlane.f32.xlu0 %v154
        %v158 = vpop.xlane.xlu0 %157
        %v159 = vmax.f32 %v156, 1e-24
        %v160 = vmax.f32 %v158, 1e-24
        %v161 = vrsqrt.pop %v159
        %v162 = vrsqrt.pop %v160
        %v163 = vmul.f32 %v151, %v161
        %v164 = vmul.f32 %v152, %v162
        %165 = vst [vmem:[%s140] sm:$0xff] %v163
        %166 = vst [vmem:[%s140 + $0x8] sm:$0xff] %v164
        %s167 = sand.u32 %s52, 1
        %s168 = scalar_lea.sflag [#allocation4], %s167
        %s169 = sand.u32 %s52, 1
        %s170 = smul.addr %s169, 16
        %s171 = scalar_lea.vmem [#allocation5], %s170
        // Predicated region
        $region29: #{tpu_custom_call.1} parent=23 // pred_check
          %p172 = pneg %p62
        $region30: #{tpu_custom_call.1} parent=23 // pred_check_branch
          %174 = sbr.rel (%p172) target = $region32
        $region31: #{tpu_custom_call.1} parent=23 // pred_region
          %s175 = smul.u32 2, %s18
          %s176 = ssub.s32 5, %s175
          %p177 = scmp.lt.s32.totalorder %s176, 2
          %s178 = scalar_select %p177, %s176, 2
          %s179 = smul.u32 128, %s178
          %s181 = ssub.s32 256, %s179
          %182 = vsyncadd %s168, %s181
          %p183 = scmp.ne.s32.totalorder 0, %s179
          %s184 = smul.addr %s175, 128
          %s185 = scalar_lea.hbm %s1, %s184
          %s186 = smul.u32 8, %s178
          %s187 = sshll.u32 %s171, 4
          %s188 = int_to_ptr.vmem [resolvable:$true] %s187
          %s189 = sshll.u32 %s186, 4
          %193 = dma.vmem_to_hbm [thread:$0]  (%p183), %s188, %s189, %s185, %s168, 128, 128, 8
        $region32: #{tpu_custom_call.1} parent=23 // pred_fallthru
          _
      $region24: #{tpu_custom_call.1} parent=5 // pred_fallthru
        _
      %p194 = scmp.le.s32.totalorder 2, %s13
      // Predicated region
      $region33: #{tpu_custom_call.1} parent=5 // pred_check
        %p195 = pneg %p194
      $region34: #{tpu_custom_call.1} parent=5 // pred_check_branch
        %197 = sbr.rel (%p195) target = $region36
      $region35: #{tpu_custom_call.1} parent=5 // pred_region
        %s198 = ssub.s32 %s13, 2
        // Predicated region
        $region37: #{tpu_custom_call.1} parent=35 // pred_check
          %p199 = pneg %p68
        $region38: #{tpu_custom_call.1} parent=35 // pred_check_branch
          %201 = sbr.rel (%p199) target = $region40
        $region39: #{tpu_custom_call.1} parent=35 // pred_region
          %s202 = sand.u32 %s53, 1
          %s203 = scalar_lea.sflag [#allocation4], %s202
          %s204 = sand.u32 %s53, 1
          %s205 = smul.addr %s204, 16
          %s206 = scalar_lea.vmem [#allocation5], %s205
          %207 = dma.done %s203, 256
        $region40: #{tpu_custom_call.1} parent=35 // pred_fallthru
          _
      $region36: #{tpu_custom_call.1} parent=5 // pred_fallthru
        _
    $region6: #{tpu_custom_call.1} parent=1 // loop_footer
      %s17 = sadd.s32 1, %s13
    $region7: #{tpu_custom_call.1} parent=1 // loop_footer_branch
      %12 = sbr.rel target = $region3
    $region8: #{tpu_custom_call.1} parent=1 // loop_exit
      _
    %208 = vsyncpa [#allocation3], 1
    %s209 = scalar_lea.sflag [#allocation3], 1
    %210 = vsyncpa %s209, 1
    %211 = vsyncpa [#allocation4], 1
    %s212 = scalar_lea.sflag [#allocation4], 1
    %213 = vsyncpa %s212, 1

</llo_original>
